<compile_context>
chip_gen: v5e
topology: v5e:2x2
jax: 0.10.0
libtpu: 0.0.40
codegen_flags: <defaults>
</compile_context>

<pallas_src>
import math
from functools import partial

import jax
import jax.numpy as jnp
from jax import lax
from jax.experimental import pallas as pl
from jax.experimental.pallas import tpu as pltpu

NEG_INF = -1e30  # finite sentinel: keeps the online softmax NaN-free


# --------------------------------------------------------------------------
# Kernel 1: fused QKV projection (one pass over x).  wq is pre-scaled by
# 1/sqrt(d_k) host-side, so Q comes out already scaled.
# --------------------------------------------------------------------------
def _qkv_proj_kernel(x_ref, wq_ref, wk_ref, wv_ref, q_ref, k_ref, v_ref):
    # x_ref: (tp, d_model); w*_ref: (d_model, d_k|d_v); outputs: (tp, d_k|d_v)
    x = x_ref[...].astype(wq_ref.dtype)   # cast in-VMEM (x read from HBM once)
    q_ref[...] = jnp.dot(x, wq_ref[...],
                         preferred_element_type=jnp.float32).astype(q_ref.dtype)
    k_ref[...] = jnp.dot(x, wk_ref[...],
                         preferred_element_type=jnp.float32).astype(k_ref.dtype)
    v_ref[...] = jnp.dot(x, wv_ref[...],
                         preferred_element_type=jnp.float32).astype(v_ref.dtype)


# --------------------------------------------------------------------------
# Kernel 2: causal flash attention over pre-projected Q/K/V.
# --------------------------------------------------------------------------
def _flash_kernel(q_ref, k_ref, v_ref, o_ref, m_scr, l_scr, acc_scr,
                  *, tq, tk, compute_dtype, exp_dtype, approx_recip):
    # q_ref: (tq, d_k)   k_ref: (tk, d_k)   v_ref: (tk, d_v)   o_ref: (tq, d_v)
    qi = pl.program_id(1)
    ki = pl.program_id(2)
    n_kv = pl.num_programs(2)

    first_row = qi * tq
    last_row = first_row + (tq - 1)
    first_col = ki * tk
    last_col = first_col + (tk - 1)

    @pl.when(ki == 0)
    def _init():
        m_scr[...] = jnp.full_like(m_scr, NEG_INF)
        l_scr[...] = jnp.zeros_like(l_scr)
        acc_scr[...] = jnp.zeros_like(acc_scr)

    def flash_update(masked):
        # Q @ K^T: contract last dims directly (no explicit transpose).
        s = lax.dot_general(
            q_ref[...], k_ref[...],
            dimension_numbers=(((1,), (1,)), ((), ())),
            preferred_element_type=jnp.float32)          # (tq, tk), f32
        if masked:  # only diagonal tiles pay for the mask; broadcast iotas
            row = first_row + lax.broadcasted_iota(jnp.int32, (tq, 1), 0)
            col = first_col + lax.broadcasted_iota(jnp.int32, (1, tk), 1)
            s = jnp.where(col <= row, s, NEG_INF)
        # online softmax update (statistics in f32)
        m_prev = m_scr[...]
        m_new = jnp.maximum(m_prev, jnp.max(s, axis=-1, keepdims=True))
        alpha = jnp.exp(m_prev - m_new)                  # (tq,1), f32, tiny
        # bf16 exp on the bf16 path (v6e/v7x EUP fast path); exact on f32 path.
        p = jnp.exp((s - m_new).astype(exp_dtype))
        l_scr[...] = alpha * l_scr[...] + jnp.sum(
            p.astype(jnp.float32), axis=-1, keepdims=True)
        acc_scr[...] = alpha * acc_scr[...] + jnp.dot(
            p.astype(compute_dtype), v_ref[...],
            preferred_element_type=jnp.float32)
        m_scr[...] = m_new

    # Diagonal (partially masked) kv tile.
    @pl.when(jnp.logical_and(first_col <= last_row, last_col > first_row))
    def _diag():
        flash_update(masked=True)

    # Fully-unmasked kv tile: no mask cost at all.
    @pl.when(last_col <= first_row)
    def _full():
        flash_update(masked=False)

    # Fully-masked tiles (first_col > last_row) are skipped entirely; their
    # K/V DMAs are also suppressed by the clamped index_map in the wrapper.

    @pl.when(ki == n_kv - 1)
    def _finalize():
        inv_l = pl.reciprocal(l_scr[...], approx=approx_recip)
        o_ref[...] = (acc_scr[...] * inv_l).astype(o_ref.dtype)


# --------------------------------------------------------------------------
# Wrapper
# --------------------------------------------------------------------------
def _pick_tile(T, cap):
    """Largest divisor of T that is <= cap and keeps (8,128)-legal blocks."""
    cap = min(cap, T)
    for d in range(cap, 0, -1):
        if T % d == 0 and (d == T or d % 8 == 0):
            return d
    return T


def head_forward(x, wq, wk, wv, *, use_bf16=True, tq=None, tk=None):
    """x: (B, T, d_model); wq/wk: (d_model, d_k); wv: (d_model, d_v)."""
    B, T, d_model = x.shape
    d_k = wq.shape[-1]
    d_v = wv.shape[-1]
    compute_dtype = jnp.bfloat16 if use_bf16 else jnp.float32
    scale = float(d_k) ** -0.5

    # tq == tk by default, largest legal divisor of T up to 512.
    if tq is None:
        tq = _pick_tile(T, 512)
    if tk is None:
        tk = tq if T % tq == 0 else _pick_tile(T, 512)
    assert T % tq == 0 and T % tk == 0, (T, tq, tk)
    tp = _pick_tile(T, 512)  # projection row-tile

    # Weights are tiny: cast (and fold the 1/sqrt(d_k) scale into wq) host-side.
    wq_c = (wq * scale).astype(compute_dtype)
    wk_c = wk.astype(compute_dtype)
    wv_c = wv.astype(compute_dtype)

    # ---- Kernel 1: QKV projection (single pass over x) ----
    q, k, v = pl.pallas_call(
        _qkv_proj_kernel,
        out_shape=(jax.ShapeDtypeStruct((B, T, d_k), compute_dtype),
                   jax.ShapeDtypeStruct((B, T, d_k), compute_dtype),
                   jax.ShapeDtypeStruct((B, T, d_v), compute_dtype)),
        grid_spec=pltpu.PrefetchScalarGridSpec(
            num_scalar_prefetch=0,
            grid=(B, T // tp),
            in_specs=[
                pl.BlockSpec((pl.Squeezed(), tp, d_model),
                             lambda b, i: (b, i, 0)),
                pl.BlockSpec((d_model, d_k), lambda b, i: (0, 0)),
                pl.BlockSpec((d_model, d_k), lambda b, i: (0, 0)),
                pl.BlockSpec((d_model, d_v), lambda b, i: (0, 0)),
            ],
            out_specs=[
                pl.BlockSpec((pl.Squeezed(), tp, d_k), lambda b, i: (b, i, 0)),
                pl.BlockSpec((pl.Squeezed(), tp, d_k), lambda b, i: (b, i, 0)),
                pl.BlockSpec((pl.Squeezed(), tp, d_v), lambda b, i: (b, i, 0)),
            ],
        ),
        compiler_params=pltpu.CompilerParams(
            dimension_semantics=("parallel", "parallel")),
    )(x, wq_c, wk_c, wv_c)

    # ---- Kernel 2: causal flash attention ----
    kernel = partial(_flash_kernel, tq=tq, tk=tk,
                     compute_dtype=compute_dtype,
                     exp_dtype=compute_dtype,   # bf16 exp on the bf16 path
                     approx_recip=use_bf16)

    # Clamp the kv block index to the last useful block for this q tile: the
    # compute for fully-masked tiles is already skipped; this also suppresses
    # their K/V DMAs (same block index => no re-fetch).
    def _kv_block(qi, ki):
        return jnp.minimum(ki, ((qi + 1) * tq - 1) // tk)

    grid = (B, T // tq, T // tk)
    out = pl.pallas_call(
        kernel,
        out_shape=jax.ShapeDtypeStruct((B, T, d_v), x.dtype),
        grid_spec=pltpu.PrefetchScalarGridSpec(
            num_scalar_prefetch=0,
            grid=grid,
            in_specs=[
                pl.BlockSpec((pl.Squeezed(), tq, d_k),
                             lambda b, qi, ki: (b, qi, 0)),
                pl.BlockSpec((pl.Squeezed(), tk, d_k),
                             lambda b, qi, ki: (b, _kv_block(qi, ki), 0)),
                pl.BlockSpec((pl.Squeezed(), tk, d_v),
                             lambda b, qi, ki: (b, _kv_block(qi, ki), 0)),
            ],
            out_specs=pl.BlockSpec((pl.Squeezed(), tq, d_v),
                                   lambda b, qi, ki: (b, qi, 0)),
            scratch_shapes=[
                pltpu.VMEM((tq, 1), jnp.float32),    # running max
                pltpu.VMEM((tq, 1), jnp.float32),    # running denom
                pltpu.VMEM((tq, d_v), jnp.float32),  # output accumulator
            ],
        ),
        compiler_params=pltpu.CompilerParams(
            dimension_semantics=("parallel", "parallel", "arbitrary")),
    )(q, k, v)
    return out


def reference_head(x, wq, wk, wv):
    """Pure-JAX reference mirroring the PyTorch forward."""
    q = x @ wq
    k = x @ wk
    v = x @ wv
    d_k = wq.shape[-1]
    scores = (q @ jnp.swapaxes(k, -2, -1)) * (d_k ** -0.5)
    T = x.shape[1]
    tril = jnp.tril(jnp.ones((T, T)))
    scores = jnp.where(tril == 0, -jnp.inf, scores)
    probs = jax.nn.softmax(scores, axis=-1)
    return probs @ v


if __name__ == "__main__":
    # config: d_model=32, d_k=16, d_v=16, context_size=8, batch=2
    B, T, d_model, d_k, d_v = 2, 8, 32, 16, 16

    key = jax.random.PRNGKey(0)
    kx, kq, kk, kv = jax.random.split(key, 4)

    x = jax.random.normal(kx, (B, T, d_model), dtype=jnp.float32)

    # nn.Linear default init: U(-1/sqrt(fan_in), 1/sqrt(fan_in)); stored
    # (d_model, d_out) so the kernel computes x @ W (== Linear(x)).
    bound = 1.0 / math.sqrt(d_model)
    wq = jax.random.uniform(kq, (d_model, d_k), jnp.float32, -bound, bound)
    wk = jax.random.uniform(kk, (d_model, d_k), jnp.float32, -bound, bound)
    wv = jax.random.uniform(kv, (d_model, d_v), jnp.float32, -bound, bound)

    ref = reference_head(x, wq, wk, wv)

    # 1) f32 path: tight check of the projection + flash/online-softmax algebra.
    out_f32 = jax.block_until_ready(head_forward(x, wq, wk, wv, use_bf16=False))
    assert out_f32.shape == (B, T, d_v)
    err_f32 = float(jnp.max(jnp.abs(out_f32 - ref)))
    assert err_f32 < 1e-4, f"f32 path max abs err {err_f32}"

    # 2) bf16-operand / f32-accumulate path (default, performance path;
    #    includes bf16 exp and approx reciprocal).
    out_bf16 = jax.block_until_ready(head_forward(x, wq, wk, wv, use_bf16=True))
    err_bf16 = float(jnp.max(jnp.abs(out_bf16 - ref)))
    assert err_bf16 < 5e-2, f"bf16 path max abs err {err_bf16}"

    # 3) multi-tile config: exercises q/kv tiling, masked-tile DMA clamp +
    #    compute skip, diagonal-tile masking, and the fully-unmasked fast path.
    T2 = 16
    x2 = jax.random.normal(jax.random.PRNGKey(1), (B, T2, d_model), jnp.float32)
    ref2 = reference_head(x2, wq, wk, wv)
    out2 = jax.block_until_ready(
        head_forward(x2, wq, wk, wv, use_bf16=False, tq=8, tk=8))
    err_tiled = float(jnp.max(jnp.abs(out2 - ref2)))
    assert err_tiled < 1e-4, f"tiled f32 path max abs err {err_tiled}"

    print("KERNEL_OK")
</pallas_src>

<mosaic_0001>
module attributes {stable_mosaic.version = 11 : i64} {
  func.func @_qkv_proj_kernel(%arg0: i32, %arg1: i32, %arg2: memref<1x8x32xf32, #tpu.memory_space<vmem>>, %arg3: memref<32x16xf32, #tpu.memory_space<vmem>>, %arg4: memref<32x16xf32, #tpu.memory_space<vmem>>, %arg5: memref<32x16xf32, #tpu.memory_space<vmem>>, %arg6: memref<1x8x16xf32, #tpu.memory_space<vmem>>, %arg7: memref<1x8x16xf32, #tpu.memory_space<vmem>>, %arg8: memref<1x8x16xf32, #tpu.memory_space<vmem>>) attributes {dimension_semantics = [#tpu.dimension_semantics<parallel>, #tpu.dimension_semantics<parallel>], iteration_bounds = array<i64: 2, 1>, scalar_prefetch = 0 : i64, scratch_operands = 0 : i64, tpu.core_type = #tpu.core_type<tc>, window_params = [{transform_indices = @transform_0, window_bounds = array<i64: 1, 8, 32>}, {pipeline_mode = #tpu.pipeline_mode<synchronous>, transform_indices = @transform_1, window_bounds = array<i64: 32, 16>}, {pipeline_mode = #tpu.pipeline_mode<synchronous>, transform_indices = @transform_2, window_bounds = array<i64: 32, 16>}, {pipeline_mode = #tpu.pipeline_mode<synchronous>, transform_indices = @transform_3, window_bounds = array<i64: 32, 16>}, {transform_indices = @transform_4, window_bounds = array<i64: 1, 8, 16>}, {transform_indices = @transform_5, window_bounds = array<i64: 1, 8, 16>}, {transform_indices = @transform_6, window_bounds = array<i64: 1, 8, 16>}]} {
    %c0 = arith.constant 0 : index
    %c0_0 = arith.constant 0 : index
    %c0_1 = arith.constant 0 : index
    %0 = vector.load %arg2[%c0, %c0_0, %c0_1] : memref<1x8x32xf32, #tpu.memory_space<vmem>>, vector<1x8x32xf32>
    %1 = vector.shape_cast %0 : vector<1x8x32xf32> to vector<8x32xf32>
    %c0_2 = arith.constant 0 : index
    %c0_3 = arith.constant 0 : index
    %2 = vector.load %arg3[%c0_2, %c0_3] : memref<32x16xf32, #tpu.memory_space<vmem>>, vector<32x16xf32>
    %cst = arith.constant dense<0.000000e+00> : vector<8x16xf32>
    %3 = tpu.matmul %1, %2, %cst {dimension_numbers = #tpu.dot_dimension_numbers<[1], [0], [0], [1], [0, 0, 1, 1], [], []>} : vector<8x32xf32>, vector<32x16xf32>, vector<8x16xf32> -> vector<8x16xf32>
    %c0_4 = arith.constant 0 : index
    %c0_5 = arith.constant 0 : index
    %c0_6 = arith.constant 0 : index
    %4 = vector.load %arg6[%c0_4, %c0_5, %c0_6] : memref<1x8x16xf32, #tpu.memory_space<vmem>>, vector<1x8x16xf32>
    %5 = vector.shape_cast %4 : vector<1x8x16xf32> to vector<8x16xf32>
    %6 = vector.shape_cast %3 : vector<8x16xf32> to vector<1x8x16xf32>
    tpu.vector_store %arg6[%c0_4, %c0_5, %c0_6], %6 {strides = array<i32>} : memref<1x8x16xf32, #tpu.memory_space<vmem>>, vector<1x8x16xf32>,
    %c0_7 = arith.constant 0 : index
    %c0_8 = arith.constant 0 : index
    %7 = vector.load %arg4[%c0_7, %c0_8] : memref<32x16xf32, #tpu.memory_space<vmem>>, vector<32x16xf32>
    %cst_9 = arith.constant dense<0.000000e+00> : vector<8x16xf32>
    %8 = tpu.matmul %1, %7, %cst_9 {dimension_numbers = #tpu.dot_dimension_numbers<[1], [0], [0], [1], [0, 0, 1, 1], [], []>} : vector<8x32xf32>, vector<32x16xf32>, vector<8x16xf32> -> vector<8x16xf32>
    %c0_10 = arith.constant 0 : index
    %c0_11 = arith.constant 0 : index
    %c0_12 = arith.constant 0 : index
    %9 = vector.load %arg7[%c0_10, %c0_11, %c0_12] : memref<1x8x16xf32, #tpu.memory_space<vmem>>, vector<1x8x16xf32>
    %10 = vector.shape_cast %9 : vector<1x8x16xf32> to vector<8x16xf32>
    %11 = vector.shape_cast %8 : vector<8x16xf32> to vector<1x8x16xf32>
    tpu.vector_store %arg7[%c0_10, %c0_11, %c0_12], %11 {strides = array<i32>} : memref<1x8x16xf32, #tpu.memory_space<vmem>>, vector<1x8x16xf32>,
    %c0_13 = arith.constant 0 : index
    %c0_14 = arith.constant 0 : index
    %12 = vector.load %arg5[%c0_13, %c0_14] : memref<32x16xf32, #tpu.memory_space<vmem>>, vector<32x16xf32>
    %cst_15 = arith.constant dense<0.000000e+00> : vector<8x16xf32>
    %13 = tpu.matmul %1, %12, %cst_15 {dimension_numbers = #tpu.dot_dimension_numbers<[1], [0], [0], [1], [0, 0, 1, 1], [], []>} : vector<8x32xf32>, vector<32x16xf32>, vector<8x16xf32> -> vector<8x16xf32>
    %c0_16 = arith.constant 0 : index
    %c0_17 = arith.constant 0 : index
    %c0_18 = arith.constant 0 : index
    %14 = vector.load %arg8[%c0_16, %c0_17, %c0_18] : memref<1x8x16xf32, #tpu.memory_space<vmem>>, vector<1x8x16xf32>
    %15 = vector.shape_cast %14 : vector<1x8x16xf32> to vector<8x16xf32>
    %16 = vector.shape_cast %13 : vector<8x16xf32> to vector<1x8x16xf32>
    tpu.vector_store %arg8[%c0_16, %c0_17, %c0_18], %16 {strides = array<i32>} : memref<1x8x16xf32, #tpu.memory_space<vmem>>, vector<1x8x16xf32>,
    return
  }
  func.func @transform_0(%arg0: i32, %arg1: i32) -> (i32, i32, i32) {
    %c0_i32 = arith.constant 0 : i32
    %c0_i32_0 = arith.constant 0 : i32
    return %arg0, %arg1, %c0_i32 : i32, i32, i32
  }
  func.func @transform_1(%arg0: i32, %arg1: i32) -> (i32, i32) {
    %c0_i32 = arith.constant 0 : i32
    %c0_i32_0 = arith.constant 0 : i32
    %c0_i32_1 = arith.constant 0 : i32
    return %c0_i32, %c0_i32_0 : i32, i32
  }
  func.func @transform_2(%arg0: i32, %arg1: i32) -> (i32, i32) {
    %c0_i32 = arith.constant 0 : i32
    %c0_i32_0 = arith.constant 0 : i32
    %c0_i32_1 = arith.constant 0 : i32
    return %c0_i32, %c0_i32_0 : i32, i32
  }
  func.func @transform_3(%arg0: i32, %arg1: i32) -> (i32, i32) {
    %c0_i32 = arith.constant 0 : i32
    %c0_i32_0 = arith.constant 0 : i32
    %c0_i32_1 = arith.constant 0 : i32
    return %c0_i32, %c0_i32_0 : i32, i32
  }
  func.func @transform_4(%arg0: i32, %arg1: i32) -> (i32, i32, i32) {
    %c0_i32 = arith.constant 0 : i32
    %c0_i32_0 = arith.constant 0 : i32
    return %arg0, %arg1, %c0_i32 : i32, i32, i32
  }
  func.func @transform_5(%arg0: i32, %arg1: i32) -> (i32, i32, i32) {
    %c0_i32 = arith.constant 0 : i32
    %c0_i32_0 = arith.constant 0 : i32
    return %arg0, %arg1, %c0_i32 : i32, i32, i32
  }
  func.func @transform_6(%arg0: i32, %arg1: i32) -> (i32, i32, i32) {
    %c0_i32 = arith.constant 0 : i32
    %c0_i32_0 = arith.constant 0 : i32
    return %arg0, %arg1, %c0_i32 : i32, i32, i32
  }
}

</mosaic_0001>

<llo_original>
// kernel: tpu_custom_call.1
$region0: #{tpu_custom_call.1}
  #allocation0 [shape = 'u32[]', space=smem, size = 0x4, offset = 0x4, fixed_abs, tag = 'smem constant byte address 0x4 - core index']
  #allocation1 [shape = 'u32[72,128]{1,0:T(1,128)}', space=vmem, size = 0x9000, scoped, tag = 'internal scratch']
  %s0 = inlined_call_operand.vmem [shape: f32[2,8,32], index: 0, kind: input, shape index: {}]
  %s1 = inlined_call_operand.vmem [shape: f32[32,16], index: 1, kind: input, shape index: {}]
  %s2 = inlined_call_operand.vmem [shape: f32[32,16], index: 2, kind: input, shape index: {}]
  %s3 = inlined_call_operand.vmem [shape: f32[32,16], index: 3, kind: input, shape index: {}]
  %s4 = inlined_call_operand.hbm [shape: f32[2,8,16], index: 4, kind: output, shape index: {0}]
  %s5 = inlined_call_operand.hbm [shape: f32[2,8,16], index: 5, kind: output, shape index: {1}]
  %s6 = inlined_call_operand.hbm [shape: f32[2,8,16], index: 6, kind: output, shape index: {2}]
  %7 = xla_tuple %s4, %s5, %s6
  %s8 = sld [smem:[#allocation0]]
  $region65: #{tpu_custom_call.1} parent=0
    _
  %s10 = ssub.s32 1, %s8
  %s11 = scalar_select 0, %s10, %s8
  $region1: #{tpu_custom_call.1} parent=0
    #allocation2 [shape = 'u8[8192]{0}', space=vmem, size = 0x2000, scoped, tag = 'output window, operand 0']
    #allocation3 [shape = 's32[2]{0}', space=sflag, size = 0x8, scoped, tag = 'scoped memory for tpu_custom_call.1']
    #allocation4 [shape = 'u8[8192]{0}', space=vmem, size = 0x2000, scoped, tag = 'output window, operand 1']
    #allocation5 [shape = 's32[2]{0}', space=sflag, size = 0x8, scoped, tag = 'scoped memory for tpu_custom_call.1']
    #allocation6 [shape = 'u8[8192]{0}', space=vmem, size = 0x2000, scoped, tag = 'output window, operand 2']
    %12 = vsyncpa [#allocation3], 0
    %s13 = scalar_lea.sflag [#allocation3], 1
    %14 = vsyncpa %s13, 0
    %15 = vsyncpa [#allocation5], 0
    %s16 = scalar_lea.sflag [#allocation5], 1
    %17 = vsyncpa %s16, 0
    loop: start=0, step=1, limit=4
    $region2: #{tpu_custom_call.1} parent=1 // loop_pre_header
      _
    $region3: #{tpu_custom_call.1} parent=1 // loop_header
      %s19 = sphi 0, %s23
      %p20 = scmp.ge.s32.totalorder %s19, 4
      %s26 = sphi 0, %s38
      %s27 = sphi 0, %s34
      %s28 = sphi 0, %s26
      %s29 = sphi 0, %s27
      %s30 = sphi 0, %s28
      %s31 = sphi 0, %s29
      %s43 = sphi 0, %s45
      %s46 = sphi 0, %s43
      %s47 = sphi 0, %s46
      %s63 = sphi 0, %s47
      %s67 = sphi 0, %s67
      %s69 = sphi 0, %s67
      %s70 = sphi 0, %s69
      %s84 = sphi 0, %s70
      %s88 = sphi 0, %s88
      %s90 = sphi 0, %s88
      %s91 = sphi 0, %s90
      %s105 = sphi 0, %s91
      %s109 = sphi 0, %s109
      %s111 = sphi 0, %s109
      %s112 = sphi 0, %s111
      %s126 = sphi 0, %s112
      %s134 = sphi 0, %s136
      %s137 = sphi 0, %s134
      %s138 = sphi 0, %s137
      %s154 = sphi 0, %s138
      %s162 = sphi 0, %s164
      %s165 = sphi 0, %s162
      %s166 = sphi 0, %s165
      %s182 = sphi 0, %s166
      %s190 = sphi 0, %s192
      %s193 = sphi 0, %s190
      %s194 = sphi 0, %s193
      %s210 = sphi 0, %s194
    $region4: #{tpu_custom_call.1} parent=1 // loop_header_branch
      %22 = sbr.rel (%p20) target = $region8
    $region5: #{tpu_custom_call.1} parent=1 // loop_body
      %s24 = ssub.s32 %s19, 1
      %s25 = ssub.s32 %s19, 2
      %s32 = sadd.s32 1, %s27
      %p33 = scmp.ge.s32.totalorder %s32, 1
      %s34 = scalar_select %p33, 0, %s32
      %s35 = sadd.s32 1, %s26
      %s36 = scalar_select %p33, %s35, %s26
      %p37 = scmp.ge.s32.totalorder %s36, 2
      %s38 = scalar_select %p37, 0, %s36
      %s39 = ssub.s32 %s26, %s38
      %s40 = ssub.s32 %s27, %s34
      %s41 = sor.u32 %s39, %s40
      %p42 = scmp.eq.s32.totalorder %s41, 0
      %s44 = sadd.s32 %s43, 1
      %s45 = scalar_select %p42, %s43, %s44
      %p48 = pneg %p42
      %p49 = scmp.eq.s32.totalorder %s19, 1
      %p50 = por %p48, %p49
      %p51 = scmp.ne.s32.totalorder %s43, %s46
      %p52 = scmp.eq.s32.totalorder %s19, 0
      %p53 = por %p51, %p52
      %p54 = scmp.ne.s32.totalorder %s43, %s46
      %p55 = scmp.eq.s32.totalorder %s24, 1
      %p56 = por %p54, %p55
      %p57 = scmp.ne.s32.totalorder %s46, %s47
      %p58 = scmp.eq.s32.totalorder %s24, 0
      %p59 = por %p57, %p58
      %p60 = scmp.ne.s32.totalorder %s46, %s47
      %p61 = scmp.eq.s32.totalorder %s25, 1
      %p62 = por %p60, %p61
      %p64 = scmp.ne.s32.totalorder %s47, %s63
      %p65 = scmp.eq.s32.totalorder %s25, 0
      %p66 = por %p64, %p65
      %s68 = sadd.s32 %s67, 1
      %p71 = scmp.eq.s32.totalorder %s19, 1
      %p72 = scmp.ne.s32.totalorder %s67, %s69
      %p73 = scmp.eq.s32.totalorder %s19, 0
      %p74 = por %p72, %p73
      %p75 = scmp.ne.s32.totalorder %s67, %s69
      %p76 = scmp.eq.s32.totalorder %s24, 1
      %p77 = por %p75, %p76
      %p78 = scmp.ne.s32.totalorder %s69, %s70
      %p79 = scmp.eq.s32.totalorder %s24, 0
      %p80 = por %p78, %p79
      %p81 = scmp.ne.s32.totalorder %s69, %s70
      %p82 = scmp.eq.s32.totalorder %s25, 1
      %p83 = por %p81, %p82
      %p85 = scmp.ne.s32.totalorder %s70, %s84
      %p86 = scmp.eq.s32.totalorder %s25, 0
      %p87 = por %p85, %p86
      %s89 = sadd.s32 %s88, 1
      %p92 = scmp.eq.s32.totalorder %s19, 1
      %p93 = scmp.ne.s32.totalorder %s88, %s90
      %p94 = scmp.eq.s32.totalorder %s19, 0
      %p95 = por %p93, %p94
      %p96 = scmp.ne.s32.totalorder %s88, %s90
      %p97 = scmp.eq.s32.totalorder %s24, 1
      %p98 = por %p96, %p97
      %p99 = scmp.ne.s32.totalorder %s90, %s91
      %p100 = scmp.eq.s32.totalorder %s24, 0
      %p101 = por %p99, %p100
      %p102 = scmp.ne.s32.totalorder %s90, %s91
      %p103 = scmp.eq.s32.totalorder %s25, 1
      %p104 = por %p102, %p103
      %p106 = scmp.ne.s32.totalorder %s91, %s105
      %p107 = scmp.eq.s32.totalorder %s25, 0
      %p108 = por %p106, %p107
      %s110 = sadd.s32 %s109, 1
      %p113 = scmp.eq.s32.totalorder %s19, 1
      %p114 = scmp.ne.s32.totalorder %s109, %s111
      %p115 = scmp.eq.s32.totalorder %s19, 0
      %p116 = por %p114, %p115
      %p117 = scmp.ne.s32.totalorder %s109, %s111
      %p118 = scmp.eq.s32.totalorder %s24, 1
      %p119 = por %p117, %p118
      %p120 = scmp.ne.s32.totalorder %s111, %s112
      %p121 = scmp.eq.s32.totalorder %s24, 0
      %p122 = por %p120, %p121
      %p123 = scmp.ne.s32.totalorder %s111, %s112
      %p124 = scmp.eq.s32.totalorder %s25, 1
      %p125 = por %p123, %p124
      %p127 = scmp.ne.s32.totalorder %s112, %s126
      %p128 = scmp.eq.s32.totalorder %s25, 0
      %p129 = por %p127, %p128
      %s130 = ssub.s32 %s26, %s38
      %s131 = ssub.s32 %s27, %s34
      %s132 = sor.u32 %s130, %s131
      %p133 = scmp.eq.s32.totalorder %s132, 0
      %s135 = sadd.s32 %s134, 1
      %s136 = scalar_select %p133, %s134, %s135
      %p139 = pneg %p133
      %p140 = scmp.eq.s32.totalorder %s19, 1
      %p141 = por %p139, %p140
      %p142 = scmp.ne.s32.totalorder %s134, %s137
      %p143 = scmp.eq.s32.totalorder %s19, 0
      %p144 = por %p142, %p143
      %p145 = scmp.ne.s32.totalorder %s134, %s137
      %p146 = scmp.eq.s32.totalorder %s24, 1
      %p147 = por %p145, %p146
      %p148 = scmp.ne.s32.totalorder %s137, %s138
      %p149 = scmp.eq.s32.totalorder %s24, 0
      %p150 = por %p148, %p149
      %p151 = scmp.ne.s32.totalorder %s137, %s138
      %p152 = scmp.eq.s32.totalorder %s25, 1
      %p153 = por %p151, %p152
      %p155 = scmp.ne.s32.totalorder %s138, %s154
      %p156 = scmp.eq.s32.totalorder %s25, 0
      %p157 = por %p155, %p156
      %s158 = ssub.s32 %s26, %s38
      %s159 = ssub.s32 %s27, %s34
      %s160 = sor.u32 %s158, %s159
      %p161 = scmp.eq.s32.totalorder %s160, 0
      %s163 = sadd.s32 %s162, 1
      %s164 = scalar_select %p161, %s162, %s163
      %p167 = pneg %p161
      %p168 = scmp.eq.s32.totalorder %s19, 1
      %p169 = por %p167, %p168
      %p170 = scmp.ne.s32.totalorder %s162, %s165
      %p171 = scmp.eq.s32.totalorder %s19, 0
      %p172 = por %p170, %p171
      %p173 = scmp.ne.s32.totalorder %s162, %s165
      %p174 = scmp.eq.s32.totalorder %s24, 1
      %p175 = por %p173, %p174
      %p176 = scmp.ne.s32.totalorder %s165, %s166
      %p177 = scmp.eq.s32.totalorder %s24, 0
      %p178 = por %p176, %p177
      %p179 = scmp.ne.s32.totalorder %s165, %s166
      %p180 = scmp.eq.s32.totalorder %s25, 1
      %p181 = por %p179, %p180
      %p183 = scmp.ne.s32.totalorder %s166, %s182
      %p184 = scmp.eq.s32.totalorder %s25, 0
      %p185 = por %p183, %p184
      %s186 = ssub.s32 %s26, %s38
      %s187 = ssub.s32 %s27, %s34
      %s188 = sor.u32 %s186, %s187
      %p189 = scmp.eq.s32.totalorder %s188, 0
      %s191 = sadd.s32 %s190, 1
      %s192 = scalar_select %p189, %s190, %s191
      %p195 = pneg %p189
      %p196 = scmp.eq.s32.totalorder %s19, 1
      %p197 = por %p195, %p196
      %p198 = scmp.ne.s32.totalorder %s190, %s193
      %p199 = scmp.eq.s32.totalorder %s19, 0
      %p200 = por %p198, %p199
      %p201 = scmp.ne.s32.totalorder %s190, %s193
      %p202 = scmp.eq.s32.totalorder %s24, 1
      %p203 = por %p201, %p202
      %p204 = scmp.ne.s32.totalorder %s193, %s194
      %p205 = scmp.eq.s32.totalorder %s24, 0
      %p206 = por %p204, %p205
      %p207 = scmp.ne.s32.totalorder %s193, %s194
      %p208 = scmp.eq.s32.totalorder %s25, 1
      %p209 = por %p207, %p208
      %p211 = scmp.ne.s32.totalorder %s194, %s210
      %p212 = scmp.eq.s32.totalorder %s25, 0
      %p213 = por %p211, %p212
      %p214 = scmp.le.s32.totalorder 1, %s19
      %p215 = scmp.lt.s32.totalorder %s19, 3
      %p216 = pnand %p214, %p215
      %p217 = pneg %p216
      // Predicated region
      $region9: #{tpu_custom_call.1} parent=5 // pred_check
        _
      $region10: #{tpu_custom_call.1} parent=5 // pred_check_branch
        %219 = sbr.rel (%p216) target = $region12
      $region11: #{tpu_custom_call.1} parent=5 // pred_region
        %s220 = ssub.s32 %s19, 1
        // Predicated region
        $region13: #{tpu_custom_call.1} parent=11 // pred_check
          %p221 = pneg %p80
        $region14: #{tpu_custom_call.1} parent=11 // pred_check_branch
          %223 = sbr.rel (%p221) target = $region16
        $region15: #{tpu_custom_call.1} parent=11 // pred_region
          _
        $region16: #{tpu_custom_call.1} parent=11 // pred_fallthru
          _
        // Predicated region
        $region17: #{tpu_custom_call.1} parent=11 // pred_check
          %p224 = pneg %p101
        $region18: #{tpu_custom_call.1} parent=11 // pred_check_branch
          %226 = sbr.rel (%p224) target = $region20
        $region19: #{tpu_custom_call.1} parent=11 // pred_region
          _
        $region20: #{tpu_custom_call.1} parent=11 // pred_fallthru
          _
        // Predicated region
        $region21: #{tpu_custom_call.1} parent=11 // pred_check
          %p227 = pneg %p122
        $region22: #{tpu_custom_call.1} parent=11 // pred_check_branch
          %229 = sbr.rel (%p227) target = $region24
        $region23: #{tpu_custom_call.1} parent=11 // pred_region
          _
        $region24: #{tpu_custom_call.1} parent=11 // pred_fallthru
          _
      $region12: #{tpu_custom_call.1} parent=5 // pred_fallthru
        _
      %p230 = scmp.lt.s32.totalorder %s19, 2
      // Predicated region
      $region25: #{tpu_custom_call.1} parent=5 // pred_check
        %p231 = pneg %p230
      $region26: #{tpu_custom_call.1} parent=5 // pred_check_branch
        %233 = sbr.rel (%p231) target = $region28
      $region27: #{tpu_custom_call.1} parent=5 // pred_region
        // Predicated region
        $region29: #{tpu_custom_call.1} parent=27 // pred_check
          %p234 = pneg %p53
        $region30: #{tpu_custom_call.1} parent=27 // pred_check_branch
          %236 = sbr.rel (%p234) target = $region32
        $region31: #{tpu_custom_call.1} parent=27 // pred_region
          %p237 = scmp.lt.s32.totalorder %s26, 1
          %s238 = scalar_select %p237, %s26, 1
          %p239 = scmp.lt.s32.totalorder %s27, 0
          %s240 = scalar_select %p239, %s27, 0
          %s241 = sadd.s32 %s240, %s238
          %s242 = smul.addr %s241, 8
          %s243 = scalar_lea.vmem %s0, %s242
        $region32: #{tpu_custom_call.1} parent=27 // pred_fallthru
          _
      $region28: #{tpu_custom_call.1} parent=5 // pred_fallthru
        _
      %p244 = scmp.le.s32.totalorder 1, %s19
      %p245 = scmp.lt.s32.totalorder %s19, 3
      %p246 = pnand %p244, %p245
      %p247 = pneg %p246
      // Predicated region
      $region33: #{tpu_custom_call.1} parent=5 // pred_check
        _
      $region34: #{tpu_custom_call.1} parent=5 // pred_check_branch
        %249 = sbr.rel (%p246) target = $region36
      $region35: #{tpu_custom_call.1} parent=5 // pred_region
        %s250 = ssub.s32 %s19, 1
        %p251 = scmp.lt.s32.totalorder %s28, 1
        %s252 = scalar_select %p251, %s28, 1
        %p253 = scmp.lt.s32.totalorder %s29, 0
        %s254 = scalar_select %p253, %s29, 0
        %s255 = sadd.s32 %s254, %s252
        %s256 = smul.addr %s255, 8
        %s257 = scalar_lea.vmem %s0, %s256
        %p258 = pneg %p59
        %p259 = pneg %p56
        %p260 = pneg %p80
        %p261 = pneg %p77
        %p262 = pneg %p101
        %p263 = pneg %p98
        %p264 = pneg %p122
        %p265 = pneg %p119
        %p266 = pneg %p150
        %p267 = pneg %p147
        %s268 = sand.u32 %s137, 1
        %s269 = scalar_lea.sflag [#allocation3], %s268
        %s270 = sand.u32 %s137, 1
        %s271 = smul.addr %s270, 8
        %s272 = scalar_lea.vmem [#allocation2], %s271
        %p273 = pneg %p178
        %p274 = pneg %p175
        %s275 = sand.u32 %s24, 1
        %s276 = scalar_lea.sflag [#allocation5], %s275
        %s277 = sand.u32 %s165, 1
        %s278 = smul.addr %s277, 8
        %s279 = scalar_lea.vmem [#allocation4], %s278
        %p280 = pneg %p206
        %p281 = pneg %p203
        %s282 = sand.u32 %s24, 1
        %s283 = scalar_lea.sflag [#allocation5], %s282
        %s284 = sand.u32 %s193, 1
        %s285 = smul.addr %s284, 8
        %s286 = scalar_lea.vmem [#allocation6], %s285
        %p287 = scmp.lt.s32.totalorder %s28, 1
        %s288 = scalar_select %p287, %s28, 1
        %p289 = scmp.lt.s32.totalorder %s29, 0
        %s290 = scalar_select %p289, %s29, 0
        %s291 = sadd.s32 %s290, %s288
        %s292 = smul.addr %s291, 8
        %s293 = scalar_lea.vmem %s0, %s292
        %v294 = vld [vmem:[%s293] sm:$0xff]
        %v295 = vld [vmem:[%s1] sm:$0xff]
        %v296 = vld [vmem:[%s1 + $0x8] sm:$0xff]
        %v297 = vld [vmem:[%s1 + $0x10] sm:$0xff]
        %v298 = vld [vmem:[%s1 + $0x18] sm:$0xff]
        %vm299 = vcmask 261120
        %v301 = vsel %vm299, %v294, 0
        %303 = vmatpush.msra.mxu0 0.0
        %304 = vmatpush.msra.mxu0 0.0
        %305 = vmatpush.msra.mxu0 0.0
        %306 = vmatpush.msra.mxu0 0.0
        %307 = vmatpush.msra.mxu0 0.0
        %308 = vmatpush.msra.mxu0 0.0
        %309 = vmatpush.msra.mxu0 0.0
        %310 = vmatpush.msra.mxu0 0.0
        %311 = vmatpush.msra.mxu0 0.0
        %312 = vmatpush.msra.mxu0 0.0
        %313 = vmatpush.msra.mxu0 0.0
        %314 = vmatpush.msra.mxu0 0.0
        %315 = vmatpush.msra.mxu0 %v298
        %316 = vmatpush.msra.mxu0 %v297
        %317 = vmatpush.msra.mxu0 %v296
        %318 = vmatpush.msra.mxu0 %v295
        %319 = vmatmul.f32.gmra.mxu0 %v301
        %v320 = vpop.f32.mrf.mxu0
        %v321 = vadd.f32 0.0, %v320
        %322 = vdwg.mxu0
        %vm323 = vcmask 130048
        %324 = vst.msk [vmem:[%s272] sm:$0xff] %vm323, %v321
        %v325 = vld [vmem:[%s2] sm:$0xff]
        %v326 = vld [vmem:[%s2 + $0x8] sm:$0xff]
        %v327 = vld [vmem:[%s2 + $0x10] sm:$0xff]
        %v328 = vld [vmem:[%s2 + $0x18] sm:$0xff]
        %329 = vmatpush.msra.mxu0 0.0
        %330 = vmatpush.msra.mxu0 0.0
        %331 = vmatpush.msra.mxu0 0.0
        %332 = vmatpush.msra.mxu0 0.0
        %333 = vmatpush.msra.mxu0 0.0
        %334 = vmatpush.msra.mxu0 0.0
        %335 = vmatpush.msra.mxu0 0.0
        %336 = vmatpush.msra.mxu0 0.0
        %337 = vmatpush.msra.mxu0 0.0
        %338 = vmatpush.msra.mxu0 0.0
        %339 = vmatpush.msra.mxu0 0.0
        %340 = vmatpush.msra.mxu0 0.0
        %341 = vmatpush.msra.mxu0 %v328
        %342 = vmatpush.msra.mxu0 %v327
        %343 = vmatpush.msra.mxu0 %v326
        %344 = vmatpush.msra.mxu0 %v325
        %345 = vmatmul.f32.gmra.mxu0 %v301
        %v346 = vpop.f32.mrf.mxu0
        %v347 = vadd.f32 0.0, %v346
        %348 = vdwg.mxu0
        %349 = vst.msk [vmem:[%s279] sm:$0xff] %vm323, %v347
        %v350 = vld [vmem:[%s3] sm:$0xff]
        %v351 = vld [vmem:[%s3 + $0x8] sm:$0xff]
        %v352 = vld [vmem:[%s3 + $0x10] sm:$0xff]
        %v353 = vld [vmem:[%s3 + $0x18] sm:$0xff]
        %354 = vmatpush.msra.mxu0 0.0
        %355 = vmatpush.msra.mxu0 0.0
        %356 = vmatpush.msra.mxu0 0.0
        %357 = vmatpush.msra.mxu0 0.0
        %358 = vmatpush.msra.mxu0 0.0
        %359 = vmatpush.msra.mxu0 0.0
        %360 = vmatpush.msra.mxu0 0.0
        %361 = vmatpush.msra.mxu0 0.0
        %362 = vmatpush.msra.mxu0 0.0
        %363 = vmatpush.msra.mxu0 0.0
        %364 = vmatpush.msra.mxu0 0.0
        %365 = vmatpush.msra.mxu0 0.0
        %366 = vmatpush.msra.mxu0 %v353
        %367 = vmatpush.msra.mxu0 %v352
        %368 = vmatpush.msra.mxu0 %v351
        %369 = vmatpush.msra.mxu0 %v350
        %370 = vmatmul.f32.gmra.mxu0 %v301
        %v371 = vpop.f32.mrf.mxu0
        %v372 = vadd.f32 0.0, %v371
        %373 = vdwg.mxu0
        %374 = vst.msk [vmem:[%s286] sm:$0xff] %vm323, %v372
        %s375 = sand.u32 %s137, 1
        %s376 = scalar_lea.sflag [#allocation3], %s375
        %s377 = sand.u32 %s137, 1
        %s378 = smul.addr %s377, 8
        %s379 = scalar_lea.vmem [#allocation2], %s378
        %s380 = sand.u32 %s24, 1
        %s381 = scalar_lea.sflag [#allocation5], %s380
        %s382 = sand.u32 %s165, 1
        %s383 = smul.addr %s382, 8
        %s384 = scalar_lea.vmem [#allocation4], %s383
        %s385 = sand.u32 %s24, 1
        %s386 = scalar_lea.sflag [#allocation5], %s385
        %s387 = sand.u32 %s193, 1
        %s388 = smul.addr %s387, 8
        %s389 = scalar_lea.vmem [#allocation6], %s388
        // Predicated region
        $region37: #{tpu_custom_call.1} parent=35 // pred_check
          %p390 = pneg %p147
        $region38: #{tpu_custom_call.1} parent=35 // pred_check_branch
          %392 = sbr.rel (%p390) target = $region40
        $region39: #{tpu_custom_call.1} parent=35 // pred_region
          %394 = vsyncadd %s376, 0
          %s395 = sadd.s32 %s29, %s28
          %s396 = smul.addr %s395, 8
          %s397 = scalar_lea.hbm %s4, %s396
          %s399 = sshll.u32 %s379, 4
          %s400 = int_to_ptr.vmem [resolvable:$true] %s399
          %s401 = sshll.u32 %s397, 4
          %s402 = int_to_ptr.hbm [resolvable:$true] %s401
          %404 = dma.vmem_to_hbm [thread:$0]  %s400, 128, %s402, %s376
        $region40: #{tpu_custom_call.1} parent=35 // pred_fallthru
          _
        // Predicated region
        $region41: #{tpu_custom_call.1} parent=35 // pred_check
          %p405 = pneg %p175
        $region42: #{tpu_custom_call.1} parent=35 // pred_check_branch
          %407 = sbr.rel (%p405) target = $region44
        $region43: #{tpu_custom_call.1} parent=35 // pred_region
          %409 = vsyncadd %s381, 0
          %s410 = sadd.s32 %s29, %s28
          %s411 = smul.addr %s410, 8
          %s412 = scalar_lea.hbm %s5, %s411
          %s414 = sshll.u32 %s384, 4
          %s415 = int_to_ptr.vmem [resolvable:$true] %s414
          %s416 = sshll.u32 %s412, 4
          %s417 = int_to_ptr.hbm [resolvable:$true] %s416
          %419 = dma.vmem_to_hbm [thread:$0]  %s415, 128, %s417, %s381
        $region44: #{tpu_custom_call.1} parent=35 // pred_fallthru
          _
        // Predicated region
        $region45: #{tpu_custom_call.1} parent=35 // pred_check
          %p420 = pneg %p203
        $region46: #{tpu_custom_call.1} parent=35 // pred_check_branch
          %422 = sbr.rel (%p420) target = $region48
        $region47: #{tpu_custom_call.1} parent=35 // pred_region
          %424 = vsyncadd %s386, 0
          %s425 = sadd.s32 %s29, %s28
          %s426 = smul.addr %s425, 8
          %s427 = scalar_lea.hbm %s6, %s426
          %s429 = sshll.u32 %s389, 4
          %s430 = int_to_ptr.vmem [resolvable:$true] %s429
          %s431 = sshll.u32 %s427, 4
          %s432 = int_to_ptr.hbm [resolvable:$true] %s431
          %434 = dma.vmem_to_hbm [thread:$0]  %s430, 128, %s432, %s386
        $region48: #{tpu_custom_call.1} parent=35 // pred_fallthru
          _
      $region36: #{tpu_custom_call.1} parent=5 // pred_fallthru
        _
      %p435 = scmp.le.s32.totalorder 2, %s19
      // Predicated region
      $region49: #{tpu_custom_call.1} parent=5 // pred_check
        %p436 = pneg %p435
      $region50: #{tpu_custom_call.1} parent=5 // pred_check_branch
        %438 = sbr.rel (%p436) target = $region52
      $region51: #{tpu_custom_call.1} parent=5 // pred_region
        %s439 = ssub.s32 %s19, 2
        // Predicated region
        $region53: #{tpu_custom_call.1} parent=51 // pred_check
          %p440 = pneg %p153
        $region54: #{tpu_custom_call.1} parent=51 // pred_check_branch
          %442 = sbr.rel (%p440) target = $region56
        $region55: #{tpu_custom_call.1} parent=51 // pred_region
          %s443 = sand.u32 %s138, 1
          %s444 = scalar_lea.sflag [#allocation3], %s443
          %s445 = sand.u32 %s138, 1
          %s446 = smul.addr %s445, 8
          %s447 = scalar_lea.vmem [#allocation2], %s446
          %449 = dma.done %s444, 128
        $region56: #{tpu_custom_call.1} parent=51 // pred_fallthru
          _
        // Predicated region
        $region57: #{tpu_custom_call.1} parent=51 // pred_check
          %p450 = pneg %p181
        $region58: #{tpu_custom_call.1} parent=51 // pred_check_branch
          %452 = sbr.rel (%p450) target = $region60
        $region59: #{tpu_custom_call.1} parent=51 // pred_region
          %s453 = sand.u32 %s25, 1
          %s454 = scalar_lea.sflag [#allocation5], %s453
          %s455 = sand.u32 %s166, 1
          %s456 = smul.addr %s455, 8
          %s457 = scalar_lea.vmem [#allocation4], %s456
          %459 = dma.done %s454, 128
        $region60: #{tpu_custom_call.1} parent=51 // pred_fallthru
          _
        // Predicated region
        $region61: #{tpu_custom_call.1} parent=51 // pred_check
          %p460 = pneg %p209
        $region62: #{tpu_custom_call.1} parent=51 // pred_check_branch
          %462 = sbr.rel (%p460) target = $region64
        $region63: #{tpu_custom_call.1} parent=51 // pred_region
          %s463 = sand.u32 %s25, 1
          %s464 = scalar_lea.sflag [#allocation5], %s463
          %s465 = sand.u32 %s194, 1
          %s466 = smul.addr %s465, 8
          %s467 = scalar_lea.vmem [#allocation6], %s466
          %469 = dma.done %s464, 128
        $region64: #{tpu_custom_call.1} parent=51 // pred_fallthru
          _
      $region52: #{tpu_custom_call.1} parent=5 // pred_fallthru
        _
    $region6: #{tpu_custom_call.1} parent=1 // loop_footer
      %s23 = sadd.s32 1, %s19
    $region7: #{tpu_custom_call.1} parent=1 // loop_footer_branch
      %18 = sbr.rel target = $region3
    $region8: #{tpu_custom_call.1} parent=1 // loop_exit
      _
    %470 = vsyncpa [#allocation3], 1
    %s471 = scalar_lea.sflag [#allocation3], 1
    %472 = vsyncpa %s471, 1
    %473 = vsyncpa [#allocation5], 1
    %s474 = scalar_lea.sflag [#allocation5], 1
    %475 = vsyncpa %s474, 1

</llo_original>
